<compile_context>
chip_gen: v5e
topology: v5e:2x2
jax: 0.10.0
libtpu: 0.0.40
codegen_flags: <defaults>
</compile_context>

<pallas_src>
import functools

import jax
import jax.numpy as jnp
from jax.experimental import pallas as pl
from jax.experimental.pallas import tpu as pltpu

_LANE = 128  # TPU vreg lane width
_SUB_F32 = 8  # f32 sublane packing


def _linear_kernel(x_ref, w_ref, b_ref, o_ref, *, compute_dtype):
    x = x_ref[...]
    if compute_dtype is not None:
        # Cast inside the kernel (VPU, hidden under the pipelined DMA); never in the wrapper.
        x = x.astype(compute_dtype)
    acc = jnp.dot(x, w_ref[...], preferred_element_type=jnp.float32)
    o_ref[...] = (acc + b_ref[...]).astype(o_ref.dtype)


def logistic_regression_forward(x, weight, bias, *, block_b=2048, compute_dtype=None):
    """Forward of LogisticRegressionModel.

    x:      [B, Din]
    weight: [Dout, Din]   (PyTorch nn.Linear layout)
    bias:   [Dout]
    returns [B, Dout] in x.dtype, computed as x @ weight.T + bias.
    """
    B, Din = x.shape
    Dout = weight.shape[0]
    out_dtype = x.dtype

    # ---- layout: fold batch rows into the lane dim when Din < 128 ------------------------
    fold = 1
    if Din < _LANE:
        cand = _LANE // Din
        if cand > 1 and B % cand == 0:
            fold = cand

    w_t = weight.T  # [Din, Dout]
    if fold > 1:
        # Block-diagonal packed weight: [fold*Din, fold*Dout] with w_t on the diagonal blocks.
        w_pack = jnp.kron(jnp.eye(fold, dtype=w_t.dtype), w_t)
        b_pack = jnp.tile(bias, fold)
        x_in = x.reshape(B // fold, fold * Din)          # contiguous reshape: free
    else:
        w_pack = w_t
        b_pack = bias
        x_in = x

    if compute_dtype is not None:
        # Weights are tiny and grid-invariant; wrapper cast is fine.  Bias stays f32 so the
        # accumulate + bias add path stays f32.
        w_pack = w_pack.astype(compute_dtype)
    b_pack = b_pack.reshape(1, -1).astype(jnp.float32)

    bf, din_eff = x_in.shape
    dout_eff = w_pack.shape[1]

    # ---- batch tiling ---------------------------------------------------------------------
    sub = 16 if x_in.dtype == jnp.bfloat16 else _SUB_F32
    block_b = max(sub, (block_b // sub) * sub)
    # Guarantee >=2 grid steps when possible so v7x megacore uses both TensorCores.
    half = -(-bf // 2)
    tb_cap = ((half + sub - 1) // sub) * sub
    tb = max(sub, min(block_b, tb_cap))
    if bf % tb != 0:
        # Prefer a tile that divides the batch exactly (no pad pass, no post-kernel slice).
        for cand in range(tb, sub - 1, -sub):
            if bf % cand == 0:
                tb = cand
                break
    bf_pad = pl.cdiv(bf, tb) * tb
    if bf_pad != bf:
        x_in = jnp.pad(x_in, ((0, bf_pad - bf), (0, 0)))

    grid = (bf_pad // tb,)
    kernel = functools.partial(_linear_kernel, compute_dtype=compute_dtype)

    # VMEM budget: resident weights (din_eff*dout_eff*4 B, single-buffered) + 2x x-tile +
    # 2x out-tile is well under every chip's scoped default at these shapes.
    # TODO(synk): add K/N tiling or vmem_limit_bytes if reused with large Din/Dout on v7x (64 MiB).
    out = pl.pallas_call(
        kernel,
        out_shape=jax.ShapeDtypeStruct((bf_pad, dout_eff), out_dtype),
        grid_spec=pl.GridSpec(
            grid=grid,
            in_specs=[
                pl.BlockSpec((tb, din_eff), lambda i: (i, 0)),        # x: tiled + pipelined
                pl.BlockSpec((din_eff, dout_eff), lambda i: (0, 0)),  # W: VMEM-resident
                pl.BlockSpec((1, dout_eff), lambda i: (0, 0)),        # bias: VMEM-resident
            ],
            out_specs=pl.BlockSpec((tb, dout_eff), lambda i: (i, 0)),
        ),
        compiler_params=pltpu.CompilerParams(
            dimension_semantics=("parallel",),
        ),
    )(x_in, w_pack, b_pack)

    if bf_pad != bf:
        out = out[:bf]
    return out.reshape(B, Dout)


if __name__ == "__main__":
    input_dim, output_dim = 32, 16

    key = jax.random.PRNGKey(0)
    kx, kw, kb = jax.random.split(key, 3)

    # Deterministic init mimicking nn.Linear's uniform(-1/sqrt(fan_in), 1/sqrt(fan_in)).
    bound = 1.0 / (input_dim ** 0.5)
    w = jax.random.uniform(kw, (output_dim, input_dim), jnp.float32, -bound, bound)
    b = jax.random.uniform(kb, (output_dim,), jnp.float32, -bound, bound)

    # Case 1: batch divisible by the fold (4) -> lane-folded layout, 2 grid steps.
    x = jax.random.normal(kx, (256, input_dim), jnp.float32)
    ref = x @ w.T + b
    out = logistic_regression_forward(x, w, b)
    jax.block_until_ready(out)
    assert out.shape == (256, output_dim)
    assert jnp.allclose(out, ref, atol=1e-4, rtol=1e-4)

    # Case 2: bf16-fed MXU path (cast happens inside the kernel; f32 accumulate + bias add).
    out_bf16 = logistic_regression_forward(x, w, b, compute_dtype=jnp.bfloat16)
    jax.block_until_ready(out_bf16)
    assert out_bf16.shape == (256, output_dim)
    assert jnp.allclose(out_bf16, ref, atol=1e-1, rtol=1e-1)

    # Case 3: batch not divisible by the fold -> un-folded fallback with batch pad + slice.
    x2 = jax.random.normal(kx, (250, input_dim), jnp.float32)
    ref2 = x2 @ w.T + b
    out2 = logistic_regression_forward(x2, w, b)
    jax.block_until_ready(out2)
    assert out2.shape == (250, output_dim)
    assert jnp.allclose(out2, ref2, atol=1e-4, rtol=1e-4)

    print("KERNEL_OK")
</pallas_src>

<mosaic_0001>
module attributes {stable_mosaic.version = 11 : i64} {
  func.func @_linear_kernel(%arg0: i32, %arg1: memref<32x128xf32, #tpu.memory_space<vmem>>, %arg2: memref<128x64xf32, #tpu.memory_space<vmem>>, %arg3: memref<1x64xf32, #tpu.memory_space<vmem>>, %arg4: memref<32x64xf32, #tpu.memory_space<vmem>>) attributes {dimension_semantics = [#tpu.dimension_semantics<parallel>], iteration_bounds = array<i64: 2>, scalar_prefetch = 0 : i64, scratch_operands = 0 : i64, tpu.core_type = #tpu.core_type<tc>, window_params = [{transform_indices = @transform_0, window_bounds = array<i64: 32, 128>}, {pipeline_mode = #tpu.pipeline_mode<synchronous>, transform_indices = @transform_1, window_bounds = array<i64: 128, 64>}, {pipeline_mode = #tpu.pipeline_mode<synchronous>, transform_indices = @transform_2, window_bounds = array<i64: 1, 64>}, {transform_indices = @transform_3, window_bounds = array<i64: 32, 64>}]} {
    %c0 = arith.constant 0 : index
    %c0_0 = arith.constant 0 : index
    %0 = vector.load %arg1[%c0, %c0_0] : memref<32x128xf32, #tpu.memory_space<vmem>>, vector<32x128xf32>
    %c0_1 = arith.constant 0 : index
    %c0_2 = arith.constant 0 : index
    %1 = vector.load %arg2[%c0_1, %c0_2] : memref<128x64xf32, #tpu.memory_space<vmem>>, vector<128x64xf32>
    %cst = arith.constant dense<0.000000e+00> : vector<32x64xf32>
    %2 = tpu.matmul %0, %1, %cst {dimension_numbers = #tpu.dot_dimension_numbers<[1], [0], [0], [1], [0, 0, 1, 1], [], []>} : vector<32x128xf32>, vector<128x64xf32>, vector<32x64xf32> -> vector<32x64xf32>
    %c0_3 = arith.constant 0 : index
    %c0_4 = arith.constant 0 : index
    %3 = vector.load %arg3[%c0_3, %c0_4] : memref<1x64xf32, #tpu.memory_space<vmem>>, vector<1x64xf32>
    %4 = vector.broadcast %3 : vector<1x64xf32> to vector<32x64xf32>
    %5 = arith.addf %2, %4 : vector<32x64xf32>
    %c0_5 = arith.constant 0 : index
    %c0_6 = arith.constant 0 : index
    %6 = vector.load %arg4[%c0_5, %c0_6] : memref<32x64xf32, #tpu.memory_space<vmem>>, vector<32x64xf32>
    tpu.vector_store %arg4[%c0_5, %c0_6], %5 {strides = array<i32>} : memref<32x64xf32, #tpu.memory_space<vmem>>, vector<32x64xf32>,
    return
  }
  func.func @transform_0(%arg0: i32) -> (i32, i32) {
    %c0_i32 = arith.constant 0 : i32
    %c0_i32_0 = arith.constant 0 : i32
    return %arg0, %c0_i32 : i32, i32
  }
  func.func @transform_1(%arg0: i32) -> (i32, i32) {
    %c0_i32 = arith.constant 0 : i32
    %c0_i32_0 = arith.constant 0 : i32
    %c0_i32_1 = arith.constant 0 : i32
    return %c0_i32, %c0_i32_0 : i32, i32
  }
  func.func @transform_2(%arg0: i32) -> (i32, i32) {
    %c0_i32 = arith.constant 0 : i32
    %c0_i32_0 = arith.constant 0 : i32
    %c0_i32_1 = arith.constant 0 : i32
    return %c0_i32, %c0_i32_0 : i32, i32
  }
  func.func @transform_3(%arg0: i32) -> (i32, i32) {
    %c0_i32 = arith.constant 0 : i32
    %c0_i32_0 = arith.constant 0 : i32
    return %arg0, %c0_i32 : i32, i32
  }
}

</mosaic_0001>

<llo_original>
// kernel: tpu_custom_call.1
$region0: #{tpu_custom_call.1}
  #allocation0 [shape = 'u32[]', space=smem, size = 0x4, offset = 0x4, fixed_abs, tag = 'smem constant byte address 0x4 - core index']
  #allocation1 [shape = 'u32[72,128]{1,0:T(1,128)}', space=vmem, size = 0x9000, scoped, tag = 'internal scratch']
  %s0 = inlined_call_operand.vmem [shape: f32[64,128], index: 0, kind: input, shape index: {}]
  %s1 = inlined_call_operand.vmem [shape: f32[128,64], index: 1, kind: input, shape index: {}]
  %s2 = inlined_call_operand.vmem [shape: f32[1,64], index: 2, kind: input, shape index: {}]
  %s3 = inlined_call_operand.hbm [shape: f32[64,64], index: 3, kind: output, shape index: {}]
  %s4 = sld [smem:[#allocation0]]
  $region45: #{tpu_custom_call.1} parent=0
    _
  %s6 = ssub.s32 1, %s4
  %s7 = scalar_select 0, %s6, %s4
  $region1: #{tpu_custom_call.1} parent=0
    #allocation2 [shape = 'u8[32768]{0}', space=vmem, size = 0x8000, scoped, tag = 'output window, operand 0']
    #allocation3 [shape = 's32[2]{0}', space=sflag, size = 0x8, scoped, tag = 'scoped memory for tpu_custom_call.1']
    %8 = vsyncpa [#allocation3], 0
    %s9 = scalar_lea.sflag [#allocation3], 1
    %10 = vsyncpa %s9, 0
    loop: start=0, step=1, limit=4
    $region2: #{tpu_custom_call.1} parent=1 // loop_pre_header
      _
    $region3: #{tpu_custom_call.1} parent=1 // loop_header
      %s12 = sphi 0, %s16
      %p13 = scmp.ge.s32.totalorder %s12, 4
      %s22 = sphi 0, %s24
      %s25 = sphi 0, %s22
      %s26 = sphi 0, %s25
      %s42 = sphi 0, %s26
      %s46 = sphi 0, %s46
      %s48 = sphi 0, %s46
      %s49 = sphi 0, %s48
      %s63 = sphi 0, %s49
      %s67 = sphi 0, %s67
      %s69 = sphi 0, %s67
      %s70 = sphi 0, %s69
      %s84 = sphi 0, %s70
      %s90 = sphi 0, %s92
      %s93 = sphi 0, %s90
      %s94 = sphi 0, %s93
      %s110 = sphi 0, %s94
    $region4: #{tpu_custom_call.1} parent=1 // loop_header_branch
      %15 = sbr.rel (%p13) target = $region8
    $region5: #{tpu_custom_call.1} parent=1 // loop_body
      %s17 = ssub.s32 %s12, 1
      %s18 = ssub.s32 %s12, 2
      %s19 = sadd.s32 %s12, 1
      %s20 = ssub.s32 %s12, %s19
      %p21 = scmp.eq.s32.totalorder %s20, 0
      %s23 = sadd.s32 %s22, 1
      %s24 = scalar_select %p21, %s22, %s23
      %p27 = pneg %p21
      %p28 = scmp.eq.s32.totalorder %s12, 1
      %p29 = por %p27, %p28
      %p30 = scmp.ne.s32.totalorder %s22, %s25
      %p31 = scmp.eq.s32.totalorder %s12, 0
      %p32 = por %p30, %p31
      %p33 = scmp.ne.s32.totalorder %s22, %s25
      %p34 = scmp.eq.s32.totalorder %s17, 1
      %p35 = por %p33, %p34
      %p36 = scmp.ne.s32.totalorder %s25, %s26
      %p37 = scmp.eq.s32.totalorder %s17, 0
      %p38 = por %p36, %p37
      %p39 = scmp.ne.s32.totalorder %s25, %s26
      %p40 = scmp.eq.s32.totalorder %s18, 1
      %p41 = por %p39, %p40
      %p43 = scmp.ne.s32.totalorder %s26, %s42
      %p44 = scmp.eq.s32.totalorder %s18, 0
      %p45 = por %p43, %p44
      %s47 = sadd.s32 %s46, 1
      %p50 = scmp.eq.s32.totalorder %s12, 1
      %p51 = scmp.ne.s32.totalorder %s46, %s48
      %p52 = scmp.eq.s32.totalorder %s12, 0
      %p53 = por %p51, %p52
      %p54 = scmp.ne.s32.totalorder %s46, %s48
      %p55 = scmp.eq.s32.totalorder %s17, 1
      %p56 = por %p54, %p55
      %p57 = scmp.ne.s32.totalorder %s48, %s49
      %p58 = scmp.eq.s32.totalorder %s17, 0
      %p59 = por %p57, %p58
      %p60 = scmp.ne.s32.totalorder %s48, %s49
      %p61 = scmp.eq.s32.totalorder %s18, 1
      %p62 = por %p60, %p61
      %p64 = scmp.ne.s32.totalorder %s49, %s63
      %p65 = scmp.eq.s32.totalorder %s18, 0
      %p66 = por %p64, %p65
      %s68 = sadd.s32 %s67, 1
      %p71 = scmp.eq.s32.totalorder %s12, 1
      %p72 = scmp.ne.s32.totalorder %s67, %s69
      %p73 = scmp.eq.s32.totalorder %s12, 0
      %p74 = por %p72, %p73
      %p75 = scmp.ne.s32.totalorder %s67, %s69
      %p76 = scmp.eq.s32.totalorder %s17, 1
      %p77 = por %p75, %p76
      %p78 = scmp.ne.s32.totalorder %s69, %s70
      %p79 = scmp.eq.s32.totalorder %s17, 0
      %p80 = por %p78, %p79
      %p81 = scmp.ne.s32.totalorder %s69, %s70
      %p82 = scmp.eq.s32.totalorder %s18, 1
      %p83 = por %p81, %p82
      %p85 = scmp.ne.s32.totalorder %s70, %s84
      %p86 = scmp.eq.s32.totalorder %s18, 0
      %p87 = por %p85, %p86
      %s88 = ssub.s32 %s12, %s19
      %p89 = scmp.eq.s32.totalorder %s88, 0
      %s91 = sadd.s32 %s90, 1
      %s92 = scalar_select %p89, %s90, %s91
      %p95 = pneg %p89
      %p96 = scmp.eq.s32.totalorder %s12, 1
      %p97 = por %p95, %p96
      %p98 = scmp.ne.s32.totalorder %s90, %s93
      %p99 = scmp.eq.s32.totalorder %s12, 0
      %p100 = por %p98, %p99
      %p101 = scmp.ne.s32.totalorder %s90, %s93
      %p102 = scmp.eq.s32.totalorder %s17, 1
      %p103 = por %p101, %p102
      %p104 = scmp.ne.s32.totalorder %s93, %s94
      %p105 = scmp.eq.s32.totalorder %s17, 0
      %p106 = por %p104, %p105
      %p107 = scmp.ne.s32.totalorder %s93, %s94
      %p108 = scmp.eq.s32.totalorder %s18, 1
      %p109 = por %p107, %p108
      %p111 = scmp.ne.s32.totalorder %s94, %s110
      %p112 = scmp.eq.s32.totalorder %s18, 0
      %p113 = por %p111, %p112
      %p114 = scmp.le.s32.totalorder 1, %s12
      %p115 = scmp.lt.s32.totalorder %s12, 3
      %p116 = pnand %p114, %p115
      %p117 = pneg %p116
      // Predicated region
      $region9: #{tpu_custom_call.1} parent=5 // pred_check
        _
      $region10: #{tpu_custom_call.1} parent=5 // pred_check_branch
        %119 = sbr.rel (%p116) target = $region12
      $region11: #{tpu_custom_call.1} parent=5 // pred_region
        %s120 = ssub.s32 %s12, 1
        // Predicated region
        $region13: #{tpu_custom_call.1} parent=11 // pred_check
          %p121 = pneg %p59
        $region14: #{tpu_custom_call.1} parent=11 // pred_check_branch
          %123 = sbr.rel (%p121) target = $region16
        $region15: #{tpu_custom_call.1} parent=11 // pred_region
          _
        $region16: #{tpu_custom_call.1} parent=11 // pred_fallthru
          _
        // Predicated region
        $region17: #{tpu_custom_call.1} parent=11 // pred_check
          %p124 = pneg %p80
        $region18: #{tpu_custom_call.1} parent=11 // pred_check_branch
          %126 = sbr.rel (%p124) target = $region20
        $region19: #{tpu_custom_call.1} parent=11 // pred_region
          _
        $region20: #{tpu_custom_call.1} parent=11 // pred_fallthru
          _
      $region12: #{tpu_custom_call.1} parent=5 // pred_fallthru
        _
      %p127 = scmp.lt.s32.totalorder %s12, 2
      // Predicated region
      $region21: #{tpu_custom_call.1} parent=5 // pred_check
        %p128 = pneg %p127
      $region22: #{tpu_custom_call.1} parent=5 // pred_check_branch
        %130 = sbr.rel (%p128) target = $region24
      $region23: #{tpu_custom_call.1} parent=5 // pred_region
        // Predicated region
        $region25: #{tpu_custom_call.1} parent=23 // pred_check
          %p131 = pneg %p32
        $region26: #{tpu_custom_call.1} parent=23 // pred_check_branch
          %133 = sbr.rel (%p131) target = $region28
        $region27: #{tpu_custom_call.1} parent=23 // pred_region
          %s134 = smul.u32 4, %s12
          %p135 = scmp.lt.s32.totalorder %s134, 7
          %s136 = scalar_select %p135, %s134, 7
          %s137 = smul.addr %s136, 8
          %s138 = scalar_lea.vmem %s0, %s137
          %s139 = smul.u32 4, %s12
        $region28: #{tpu_custom_call.1} parent=23 // pred_fallthru
          _
      $region24: #{tpu_custom_call.1} parent=5 // pred_fallthru
        _
      %p140 = scmp.le.s32.totalorder 1, %s12
      %p141 = scmp.lt.s32.totalorder %s12, 3
      %p142 = pnand %p140, %p141
      %p143 = pneg %p142
      // Predicated region
      $region29: #{tpu_custom_call.1} parent=5 // pred_check
        _
      $region30: #{tpu_custom_call.1} parent=5 // pred_check_branch
        %145 = sbr.rel (%p142) target = $region32
      $region31: #{tpu_custom_call.1} parent=5 // pred_region
        %s146 = ssub.s32 %s12, 1
        %s147 = smul.u32 4, %s17
        %p148 = scmp.lt.s32.totalorder %s147, 7
        %s149 = scalar_select %p148, %s147, 7
        %s150 = smul.addr %s149, 8
        %s151 = scalar_lea.vmem %s0, %s150
        %p152 = pneg %p38
        %p153 = pneg %p35
        %p154 = pneg %p59
        %p155 = pneg %p56
        %p156 = pneg %p80
        %p157 = pneg %p77
        %p158 = pneg %p106
        %p159 = pneg %p103
        %s160 = sand.u32 %s93, 1
        %s161 = scalar_lea.sflag [#allocation3], %s160
        %s162 = sand.u32 %s93, 1
        %s163 = smul.addr %s162, 32
        %s164 = scalar_lea.vmem [#allocation2], %s163
        %s165 = smul.u32 4, %s17
        %p166 = scmp.lt.s32.totalorder %s165, 7
        %s167 = scalar_select %p166, %s165, 7
        %s168 = smul.addr %s167, 8
        %s169 = scalar_lea.vmem %s0, %s168
        %s170 = smul.u32 4, %s17
        %s171 = smul.u32 4, %s17
        %v172 = vld [vmem:[%s169] sm:$0xff]
        %v173 = vld [vmem:[%s169 + $0x8] sm:$0xff]
        %v174 = vld [vmem:[%s169 + $0x10] sm:$0xff]
        %v175 = vld [vmem:[%s169 + $0x18] sm:$0xff]
        %v176 = vld [vmem:[%s1] sm:$0xff]
        %v177 = vld [vmem:[%s1 + $0x8] sm:$0xff]
        %v178 = vld [vmem:[%s1 + $0x10] sm:$0xff]
        %v179 = vld [vmem:[%s1 + $0x18] sm:$0xff]
        %v180 = vld [vmem:[%s1 + $0x20] sm:$0xff]
        %v181 = vld [vmem:[%s1 + $0x28] sm:$0xff]
        %v182 = vld [vmem:[%s1 + $0x30] sm:$0xff]
        %v183 = vld [vmem:[%s1 + $0x38] sm:$0xff]
        %v184 = vld [vmem:[%s1 + $0x40] sm:$0xff]
        %v185 = vld [vmem:[%s1 + $0x48] sm:$0xff]
        %v186 = vld [vmem:[%s1 + $0x50] sm:$0xff]
        %v187 = vld [vmem:[%s1 + $0x58] sm:$0xff]
        %v188 = vld [vmem:[%s1 + $0x60] sm:$0xff]
        %v189 = vld [vmem:[%s1 + $0x68] sm:$0xff]
        %v190 = vld [vmem:[%s1 + $0x70] sm:$0xff]
        %v191 = vld [vmem:[%s1 + $0x78] sm:$0xff]
        %v192 = vld [vmem:[%s2] sm:$0x1]
        %v194 = vperm.slane %v192, 0
        %196 = vmatpush.msra.mxu0 %v191
        %197 = vmatpush.msra.mxu0 %v190
        %198 = vmatpush.msra.mxu0 %v189
        %199 = vmatpush.msra.mxu0 %v188
        %200 = vmatpush.msra.mxu0 %v187
        %201 = vmatpush.msra.mxu0 %v186
        %202 = vmatpush.msra.mxu0 %v185
        %203 = vmatpush.msra.mxu0 %v184
        %204 = vmatpush.msra.mxu0 %v183
        %205 = vmatpush.msra.mxu0 %v182
        %206 = vmatpush.msra.mxu0 %v181
        %207 = vmatpush.msra.mxu0 %v180
        %208 = vmatpush.msra.mxu0 %v179
        %209 = vmatpush.msra.mxu0 %v178
        %210 = vmatpush.msra.mxu0 %v177
        %211 = vmatpush.msra.mxu0 %v176
        %212 = vmatmul.f32.gmra.mxu0 %v172
        %v213 = vpop.f32.mrf.mxu0
        %v214 = vadd.f32 %v194, %v213
        %215 = vmatmul.f32.gmra.mxu0 %v173
        %v216 = vpop.f32.mrf.mxu0
        %v217 = vadd.f32 %v194, %v216
        %218 = vmatmul.f32.gmra.mxu0 %v174
        %v219 = vpop.f32.mrf.mxu0
        %v220 = vadd.f32 %v194, %v219
        %221 = vmatmul.f32.gmra.mxu0 %v175
        %v222 = vpop.f32.mrf.mxu0
        %v223 = vadd.f32 %v194, %v222
        %224 = vdwg.mxu0
        %vm225 = vcmask 523264
        %226 = vst.msk [vmem:[%s164] sm:$0xff] %vm225, %v214
        %227 = vst.msk [vmem:[%s164 + $0x8] sm:$0xff] %vm225, %v217
        %228 = vst.msk [vmem:[%s164 + $0x10] sm:$0xff] %vm225, %v220
        %229 = vst.msk [vmem:[%s164 + $0x18] sm:$0xff] %vm225, %v223
        %s230 = sand.u32 %s93, 1
        %s231 = scalar_lea.sflag [#allocation3], %s230
        %s232 = sand.u32 %s93, 1
        %s233 = smul.addr %s232, 32
        %s234 = scalar_lea.vmem [#allocation2], %s233
        // Predicated region
        $region33: #{tpu_custom_call.1} parent=31 // pred_check
          %p235 = pneg %p103
        $region34: #{tpu_custom_call.1} parent=31 // pred_check_branch
          %237 = sbr.rel (%p235) target = $region36
        $region35: #{tpu_custom_call.1} parent=31 // pred_region
          %s238 = smul.u32 4, %s17
          %240 = vsyncadd %s231, 0
          %s241 = smul.addr %s238, 8
          %s242 = scalar_lea.hbm %s3, %s241
          %s243 = sshll.u32 %s234, 4
          %s244 = int_to_ptr.vmem [resolvable:$true] %s243
          %s245 = sshll.u32 %s242, 4
          %s246 = int_to_ptr.hbm [resolvable:$true] %s245
          %251 = dma.vmem_to_hbm [thread:$0]  %s244, 512, %s246, %s231, 128, 128, 8
        $region36: #{tpu_custom_call.1} parent=31 // pred_fallthru
          _
      $region32: #{tpu_custom_call.1} parent=5 // pred_fallthru
        _
      %p252 = scmp.le.s32.totalorder 2, %s12
      // Predicated region
      $region37: #{tpu_custom_call.1} parent=5 // pred_check
        %p253 = pneg %p252
      $region38: #{tpu_custom_call.1} parent=5 // pred_check_branch
        %255 = sbr.rel (%p253) target = $region40
      $region39: #{tpu_custom_call.1} parent=5 // pred_region
        %s256 = ssub.s32 %s12, 2
        // Predicated region
        $region41: #{tpu_custom_call.1} parent=39 // pred_check
          %p257 = pneg %p109
        $region42: #{tpu_custom_call.1} parent=39 // pred_check_branch
          %259 = sbr.rel (%p257) target = $region44
        $region43: #{tpu_custom_call.1} parent=39 // pred_region
          %s260 = sand.u32 %s94, 1
          %s261 = scalar_lea.sflag [#allocation3], %s260
          %s262 = sand.u32 %s94, 1
          %s263 = smul.addr %s262, 32
          %s264 = scalar_lea.vmem [#allocation2], %s263
          %266 = dma.done %s261, 512
        $region44: #{tpu_custom_call.1} parent=39 // pred_fallthru
          _
      $region40: #{tpu_custom_call.1} parent=5 // pred_fallthru
        _
    $region6: #{tpu_custom_call.1} parent=1 // loop_footer
      %s16 = sadd.s32 1, %s12
    $region7: #{tpu_custom_call.1} parent=1 // loop_footer_branch
      %11 = sbr.rel target = $region3
    $region8: #{tpu_custom_call.1} parent=1 // loop_exit
      _
    %267 = vsyncpa [#allocation3], 1
    %s268 = scalar_lea.sflag [#allocation3], 1
    %269 = vsyncpa %s268, 1

</llo_original>
